<compile_context>
chip_gen: v6e
topology: v6e:2x2x1
jax: 0.10.0
libtpu: 0.0.40
codegen_flags: <defaults>
</compile_context>

<pallas_src>
import functools

import jax
import jax.numpy as jnp
from jax.experimental import pallas as pl
from jax.experimental.pallas import tpu as pltpu

DIMS = [(27, 128), (128, 64), (64, 32), (32, 7)]
IN_FEATURES = DIMS[0][0]          # 27 (raw input)
IN_FEATURES_AUG = IN_FEATURES + 1  # 28 (ones column appended to fold b1)
OUT_FEATURES = DIMS[-1][1]         # 7


def mlp_kernel(x_ref,
               w1_ref,            # (28, 128)  bf16, bias folded into last row
               w2_ref, b2_ref,    # (128, 64) bf16, (1, 64) bf16
               w3_ref, b3_ref,    # (64, 32)  bf16, (1, 32) bf16
               w4_ref, b4_ref,    # (32, 7)   bf16, (1, 7)  f32
               o_ref,             # (tile_b, 7) f32
               *, chunk):
    tile_b = x_ref.shape[0]
    n_chunks = tile_b // chunk     # static; tile_b is always a multiple of chunk

    # Weights are tiny; load once per tile.
    w1 = w1_ref[...]
    w2 = w2_ref[...]
    b2 = b2_ref[...]
    w3 = w3_ref[...]
    b3 = b3_ref[...]
    w4 = w4_ref[...]
    b4 = b4_ref[...]

    # Fully-unrolled static loop over batch sub-chunks: intermediates for each sub-chunk
    # stay in vregs instead of being materialized as (tile_b, 128) VMEM temporaries.
    for c in range(n_chunks):
        rows = pl.ds(c * chunk, chunk)          # static start/size
        xc = x_ref[rows, :]                      # (chunk, 28) bf16

        # layer1: Linear(27->128) [+bias folded] + ReLU (f32 accumulate, bf16 epilogue)
        h = jnp.dot(xc, w1, preferred_element_type=jnp.float32)
        h = jnp.maximum(h.astype(jnp.bfloat16), 0)

        # layer2: Linear(128->64) + ReLU
        h = jnp.dot(h, w2, preferred_element_type=jnp.float32)
        h = jnp.maximum(h.astype(jnp.bfloat16) + b2, 0)

        # layer3: Linear(64->32) + ReLU
        h = jnp.dot(h, w3, preferred_element_type=jnp.float32)
        h = jnp.maximum(h.astype(jnp.bfloat16) + b3, 0)

        # layer4: Linear(32->7), f32 bias add, f32 logits
        h = jnp.dot(h, w4, preferred_element_type=jnp.float32) + b4

        o_ref[rows, :] = h.astype(o_ref.dtype)


def _round_up(v, m):
    return ((v + m - 1) // m) * m


def classifier_forward(x, params, *, desired_tile_b=2048, chunk=256):
    """x: (B, 27) float32.  params: dict of weights/biases.  Returns (B, 7) float32 logits."""
    B = x.shape[0]

    # Fold b1 into w1: append a ones column to x (27->28) and the bias row to w1.
    ones = jnp.ones((B, 1), dtype=x.dtype)
    x_aug = jnp.concatenate([x, ones], axis=1).astype(jnp.bfloat16)          # (B, 28)
    w1 = jnp.concatenate([params["w1"], params["b1"]], axis=0).astype(jnp.bfloat16)
    w2 = params["w2"].astype(jnp.bfloat16)
    b2 = params["b2"].astype(jnp.bfloat16)
    w3 = params["w3"].astype(jnp.bfloat16)
    b3 = params["b3"].astype(jnp.bfloat16)
    w4 = params["w4"].astype(jnp.bfloat16)
    b4 = params["b4"]                                                         # f32 logit bias

    # ---- batch tile selection -------------------------------------------------
    # Small batches: one block rounded to a 16-row (bf16 sublane) multiple.
    # Larger batches: multiple of `chunk`, capped at desired_tile_b, and no larger than
    # ~half the batch so the grid has >= 2 steps (lets v7x shard across both TensorCores).
    if B <= chunk:
        tile_b = max(16, _round_up(B, 16))
        chunk = tile_b
    else:
        tile_b = min(_round_up(desired_tile_b, chunk),
                     _round_up(pl.cdiv(B, 2), chunk))
    grid = (pl.cdiv(B, tile_b),)   # last block may be partial; see invariant in the header

    def const_spec(arr):
        # Full-array block + constant index map -> DMA'd once, resident across all tiles.
        return pl.BlockSpec(arr.shape, lambda i: (0, 0))

    in_specs = [
        pl.BlockSpec((tile_b, IN_FEATURES_AUG), lambda i: (i, 0)),   # x: batch-tiled
        const_spec(w1),
        const_spec(w2), const_spec(b2),
        const_spec(w3), const_spec(b3),
        const_spec(w4), const_spec(b4),
    ]
    out_specs = pl.BlockSpec((tile_b, OUT_FEATURES), lambda i: (i, 0))

    aug_dims = [(IN_FEATURES_AUG, 128)] + DIMS[1:]
    flops_per_row = 2 * sum(fi * fo for fi, fo in aug_dims)
    weight_bytes = sum(fi * fo * 2 + fo * 2 for fi, fo in aug_dims)
    cost = pl.CostEstimate(
        flops=flops_per_row * B,
        transcendentals=0,
        bytes_accessed=B * IN_FEATURES_AUG * 2 + weight_bytes + B * OUT_FEATURES * 4,
    )

    out = pl.pallas_call(
        functools.partial(mlp_kernel, chunk=chunk),
        out_shape=jax.ShapeDtypeStruct((B, OUT_FEATURES), jnp.float32),
        grid=grid,
        in_specs=in_specs,
        out_specs=out_specs,
        compiler_params=pltpu.CompilerParams(
            dimension_semantics=("parallel",)),   # megacore split on v7x
        cost_estimate=cost,
    )(x_aug, w1, w2, b2, w3, b3, w4, b4)

    return out


def init_params(key):
    """Deterministic init mirroring nn.Linear shapes (stored transposed: (in, out))."""
    params = {}
    for idx, (fan_in, fan_out) in enumerate(DIMS, start=1):
        key, wk, bk = jax.random.split(key, 3)
        bound = 1.0 / (fan_in ** 0.5)
        params[f"w{idx}"] = jax.random.uniform(
            wk, (fan_in, fan_out), jnp.float32, minval=-bound, maxval=bound)
        # biases kept 2D (1, out) for clean TPU broadcasting inside the kernel
        params[f"b{idx}"] = jax.random.uniform(
            bk, (1, fan_out), jnp.float32, minval=-bound, maxval=bound)
    return params


def reference_matched(x, params):
    """Plain-JAX reference using the exact kernel precision (bf16 MXU, f32 accum, bf16 epilogue)."""
    ones = jnp.ones((x.shape[0], 1), dtype=x.dtype)
    xb = jnp.concatenate([x, ones], axis=1).astype(jnp.bfloat16)
    w1 = jnp.concatenate([params["w1"], params["b1"]], axis=0).astype(jnp.bfloat16)
    h = jnp.dot(xb, w1, preferred_element_type=jnp.float32)
    h = jnp.maximum(h.astype(jnp.bfloat16), 0)
    for i in (2, 3):
        h = jnp.dot(h, params[f"w{i}"].astype(jnp.bfloat16),
                    preferred_element_type=jnp.float32)
        h = jnp.maximum(h.astype(jnp.bfloat16) + params[f"b{i}"].astype(jnp.bfloat16), 0)
    return jnp.dot(h, params["w4"].astype(jnp.bfloat16),
                   preferred_element_type=jnp.float32) + params["b4"]


def reference_f32(x, params):
    """Full-f32 reference matching the PyTorch module's math (bf16 drift expected vs kernel)."""
    h = x
    for i in (1, 2, 3):
        h = jnp.maximum(jnp.dot(h, params[f"w{i}"]) + params[f"b{i}"], 0.0)
    return jnp.dot(h, params["w4"]) + params["b4"]


if __name__ == "__main__":
    key = jax.random.PRNGKey(0)
    pkey, xkey1, xkey2 = jax.random.split(key, 3)
    params = init_params(pkey)

    fwd = jax.jit(classifier_forward)

    # --- small batch: single grid step -------------------------------------
    B1 = 8
    x1 = jax.random.normal(xkey1, (B1, IN_FEATURES), dtype=jnp.float32)
    out1 = fwd(x1, params)
    jax.block_until_ready(out1)
    ref1 = reference_matched(x1, params)
    ref1_f32 = reference_f32(x1, params)
    assert out1.shape == (B1, OUT_FEATURES)
    assert jnp.allclose(out1, ref1, atol=2e-2, rtol=2e-2), (
        f"matched-precision max abs err: {jnp.max(jnp.abs(out1 - ref1))}")
    # Loose check vs the true f32 model (bf16 activations introduce ~1e-2 drift).
    assert jnp.allclose(out1, ref1_f32, atol=2e-1, rtol=2e-1), (
        f"f32-reference max abs err: {jnp.max(jnp.abs(out1 - ref1_f32))}")

    # --- ragged multi-tile batch: >=2 grid steps, partial last block --------
    B2 = 300
    x2 = jax.random.normal(xkey2, (B2, IN_FEATURES), dtype=jnp.float32)
    out2 = fwd(x2, params)
    jax.block_until_ready(out2)
    ref2 = reference_matched(x2, params)
    assert out2.shape == (B2, OUT_FEATURES)
    assert jnp.allclose(out2, ref2, atol=2e-2, rtol=2e-2), (
        f"ragged-batch max abs err: {jnp.max(jnp.abs(out2 - ref2))}")

    print("KERNEL_OK")
</pallas_src>

<mosaic_0001>
module attributes {stable_mosaic.version = 11 : i64} {
  func.func @mlp_kernel(%arg0: i32, %arg1: memref<16x28xbf16, #tpu.memory_space<vmem>>, %arg2: memref<28x128xbf16, #tpu.memory_space<vmem>>, %arg3: memref<128x64xbf16, #tpu.memory_space<vmem>>, %arg4: memref<1x64xbf16, #tpu.memory_space<vmem>>, %arg5: memref<64x32xbf16, #tpu.memory_space<vmem>>, %arg6: memref<1x32xbf16, #tpu.memory_space<vmem>>, %arg7: memref<32x7xbf16, #tpu.memory_space<vmem>>, %arg8: memref<1x7xf32, #tpu.memory_space<vmem>>, %arg9: memref<16x7xf32, #tpu.memory_space<vmem>>) attributes {dimension_semantics = [#tpu.dimension_semantics<parallel>], iteration_bounds = array<i64: 1>, scalar_prefetch = 0 : i64, scratch_operands = 0 : i64, tpu.core_type = #tpu.core_type<tc>, window_params = [{transform_indices = @transform_0, window_bounds = array<i64: 16, 28>}, {pipeline_mode = #tpu.pipeline_mode<synchronous>, transform_indices = @transform_1, window_bounds = array<i64: 28, 128>}, {pipeline_mode = #tpu.pipeline_mode<synchronous>, transform_indices = @transform_2, window_bounds = array<i64: 128, 64>}, {pipeline_mode = #tpu.pipeline_mode<synchronous>, transform_indices = @transform_3, window_bounds = array<i64: 1, 64>}, {pipeline_mode = #tpu.pipeline_mode<synchronous>, transform_indices = @transform_4, window_bounds = array<i64: 64, 32>}, {pipeline_mode = #tpu.pipeline_mode<synchronous>, transform_indices = @transform_5, window_bounds = array<i64: 1, 32>}, {pipeline_mode = #tpu.pipeline_mode<synchronous>, transform_indices = @transform_6, window_bounds = array<i64: 32, 7>}, {pipeline_mode = #tpu.pipeline_mode<synchronous>, transform_indices = @transform_7, window_bounds = array<i64: 1, 7>}, {transform_indices = @transform_8, window_bounds = array<i64: 16, 7>}]} {
    %c0 = arith.constant 0 : index
    %c0_0 = arith.constant 0 : index
    %0 = vector.load %arg2[%c0, %c0_0] : memref<28x128xbf16, #tpu.memory_space<vmem>>, vector<28x128xbf16>
    %c0_1 = arith.constant 0 : index
    %c0_2 = arith.constant 0 : index
    %1 = vector.load %arg3[%c0_1, %c0_2] : memref<128x64xbf16, #tpu.memory_space<vmem>>, vector<128x64xbf16>
    %c0_3 = arith.constant 0 : index
    %c0_4 = arith.constant 0 : index
    %2 = vector.load %arg4[%c0_3, %c0_4] : memref<1x64xbf16, #tpu.memory_space<vmem>>, vector<1x64xbf16>
    %c0_5 = arith.constant 0 : index
    %c0_6 = arith.constant 0 : index
    %3 = vector.load %arg5[%c0_5, %c0_6] : memref<64x32xbf16, #tpu.memory_space<vmem>>, vector<64x32xbf16>
    %c0_7 = arith.constant 0 : index
    %c0_8 = arith.constant 0 : index
    %4 = vector.load %arg6[%c0_7, %c0_8] : memref<1x32xbf16, #tpu.memory_space<vmem>>, vector<1x32xbf16>
    %c0_9 = arith.constant 0 : index
    %c0_10 = arith.constant 0 : index
    %5 = vector.load %arg7[%c0_9, %c0_10] : memref<32x7xbf16, #tpu.memory_space<vmem>>, vector<32x7xbf16>
    %c0_11 = arith.constant 0 : index
    %c0_12 = arith.constant 0 : index
    %6 = vector.load %arg8[%c0_11, %c0_12] : memref<1x7xf32, #tpu.memory_space<vmem>>, vector<1x7xf32>
    %c0_13 = arith.constant 0 : index
    %c0_14 = arith.constant 0 : index
    %7 = vector.load %arg1[%c0_13, %c0_14] : memref<16x28xbf16, #tpu.memory_space<vmem>>, vector<16x28xbf16>
    %cst = arith.constant dense<0.000000e+00> : vector<16x128xf32>
    %8 = tpu.matmul %7, %0, %cst {dimension_numbers = #tpu.dot_dimension_numbers<[1], [0], [0], [1], [0, 0, 1, 1], [], []>} : vector<16x28xbf16>, vector<28x128xbf16>, vector<16x128xf32> -> vector<16x128xf32>
    %9 = arith.truncf %8 : vector<16x128xf32> to vector<16x128xbf16>
    %cst_15 = arith.constant 0.000000e+00 : bf16
    %10 = vector.broadcast %cst_15 : bf16 to vector<16x128xbf16>
    %11 = arith.maximumf %9, %10 : vector<16x128xbf16>
    %cst_16 = arith.constant dense<0.000000e+00> : vector<16x64xf32>
    %12 = tpu.matmul %11, %1, %cst_16 {dimension_numbers = #tpu.dot_dimension_numbers<[1], [0], [0], [1], [0, 0, 1, 1], [], []>} : vector<16x128xbf16>, vector<128x64xbf16>, vector<16x64xf32> -> vector<16x64xf32>
    %13 = arith.truncf %12 : vector<16x64xf32> to vector<16x64xbf16>
    %14 = vector.broadcast %2 : vector<1x64xbf16> to vector<16x64xbf16>
    %15 = arith.addf %13, %14 : vector<16x64xbf16>
    %cst_17 = arith.constant 0.000000e+00 : bf16
    %16 = vector.broadcast %cst_17 : bf16 to vector<16x64xbf16>
    %17 = arith.maximumf %15, %16 : vector<16x64xbf16>
    %cst_18 = arith.constant dense<0.000000e+00> : vector<16x32xf32>
    %18 = tpu.matmul %17, %3, %cst_18 {dimension_numbers = #tpu.dot_dimension_numbers<[1], [0], [0], [1], [0, 0, 1, 1], [], []>} : vector<16x64xbf16>, vector<64x32xbf16>, vector<16x32xf32> -> vector<16x32xf32>
    %19 = arith.truncf %18 : vector<16x32xf32> to vector<16x32xbf16>
    %20 = vector.broadcast %4 : vector<1x32xbf16> to vector<16x32xbf16>
    %21 = arith.addf %19, %20 : vector<16x32xbf16>
    %cst_19 = arith.constant 0.000000e+00 : bf16
    %22 = vector.broadcast %cst_19 : bf16 to vector<16x32xbf16>
    %23 = arith.maximumf %21, %22 : vector<16x32xbf16>
    %cst_20 = arith.constant dense<0.000000e+00> : vector<16x7xf32>
    %24 = tpu.matmul %23, %5, %cst_20 {dimension_numbers = #tpu.dot_dimension_numbers<[1], [0], [0], [1], [0, 0, 1, 1], [], []>} : vector<16x32xbf16>, vector<32x7xbf16>, vector<16x7xf32> -> vector<16x7xf32>
    %25 = vector.broadcast %6 : vector<1x7xf32> to vector<16x7xf32>
    %26 = arith.addf %24, %25 : vector<16x7xf32>
    %c0_21 = arith.constant 0 : index
    %c0_22 = arith.constant 0 : index
    %27 = vector.load %arg9[%c0_21, %c0_22] : memref<16x7xf32, #tpu.memory_space<vmem>>, vector<16x7xf32>
    tpu.vector_store %arg9[%c0_21, %c0_22], %26 {strides = array<i32>} : memref<16x7xf32, #tpu.memory_space<vmem>>, vector<16x7xf32>,
    return
  }
  func.func @transform_0(%arg0: i32) -> (i32, i32) {
    %c0_i32 = arith.constant 0 : i32
    %c0_i32_0 = arith.constant 0 : i32
    return %arg0, %c0_i32 : i32, i32
  }
  func.func @transform_1(%arg0: i32) -> (i32, i32) {
    %c0_i32 = arith.constant 0 : i32
    %c0_i32_0 = arith.constant 0 : i32
    %c0_i32_1 = arith.constant 0 : i32
    return %c0_i32, %c0_i32_0 : i32, i32
  }
  func.func @transform_2(%arg0: i32) -> (i32, i32) {
    %c0_i32 = arith.constant 0 : i32
    %c0_i32_0 = arith.constant 0 : i32
    %c0_i32_1 = arith.constant 0 : i32
    return %c0_i32, %c0_i32_0 : i32, i32
  }
  func.func @transform_3(%arg0: i32) -> (i32, i32) {
    %c0_i32 = arith.constant 0 : i32
    %c0_i32_0 = arith.constant 0 : i32
    %c0_i32_1 = arith.constant 0 : i32
    return %c0_i32, %c0_i32_0 : i32, i32
  }
  func.func @transform_4(%arg0: i32) -> (i32, i32) {
    %c0_i32 = arith.constant 0 : i32
    %c0_i32_0 = arith.constant 0 : i32
    %c0_i32_1 = arith.constant 0 : i32
    return %c0_i32, %c0_i32_0 : i32, i32
  }
  func.func @transform_5(%arg0: i32) -> (i32, i32) {
    %c0_i32 = arith.constant 0 : i32
    %c0_i32_0 = arith.constant 0 : i32
    %c0_i32_1 = arith.constant 0 : i32
    return %c0_i32, %c0_i32_0 : i32, i32
  }
  func.func @transform_6(%arg0: i32) -> (i32, i32) {
    %c0_i32 = arith.constant 0 : i32
    %c0_i32_0 = arith.constant 0 : i32
    %c0_i32_1 = arith.constant 0 : i32
    return %c0_i32, %c0_i32_0 : i32, i32
  }
  func.func @transform_7(%arg0: i32) -> (i32, i32) {
    %c0_i32 = arith.constant 0 : i32
    %c0_i32_0 = arith.constant 0 : i32
    %c0_i32_1 = arith.constant 0 : i32
    return %c0_i32, %c0_i32_0 : i32, i32
  }
  func.func @transform_8(%arg0: i32) -> (i32, i32) {
    %c0_i32 = arith.constant 0 : i32
    %c0_i32_0 = arith.constant 0 : i32
    return %arg0, %c0_i32 : i32, i32
  }
}

</mosaic_0001>

<llo_original>
// kernel: classifier_forward.1
$region0: #{classifier_forward.1}
  #allocation0 [shape = 'u32[]', space=smem, size = 0x4, offset = 0x4, fixed_abs, tag = 'smem constant byte address 0x4 - core index']
  #allocation1 [shape = 'u32[144,128]{1,0:T(1,128)}', space=vmem, size = 0x12000, scoped, tag = 'internal scratch']
  %s0 = inlined_call_operand.vmem [shape: bf16[8,28], index: 0, kind: input, shape index: {}]
  %s1 = inlined_call_operand.vmem [shape: bf16[28,128], index: 1, kind: input, shape index: {}]
  %s2 = inlined_call_operand.vmem [shape: bf16[128,64], index: 2, kind: input, shape index: {}]
  %s3 = inlined_call_operand.vmem [shape: bf16[1,64], index: 3, kind: input, shape index: {}]
  %s4 = inlined_call_operand.vmem [shape: bf16[64,32], index: 4, kind: input, shape index: {}]
  %s5 = inlined_call_operand.vmem [shape: bf16[1,32], index: 5, kind: input, shape index: {}]
  %s6 = inlined_call_operand.vmem [shape: bf16[32,7], index: 6, kind: input, shape index: {}]
  %s7 = inlined_call_operand.vmem [shape: f32[1,7], index: 7, kind: input, shape index: {}]
  %s8 = inlined_call_operand.hbm [shape: f32[8,7], index: 8, kind: output, shape index: {}]
  %s9 = sld [smem:[#allocation0]]
  $region42: #{classifier_forward.1} parent=0
    _
  %s11 = ssub.s32 1, %s9
  %s12 = scalar_select 0, %s11, %s9
  $region1: #{classifier_forward.1} parent=0
    #allocation2 [shape = 'u8[8192]{0}', space=vmem, size = 0x2000, scoped, tag = 'output window, operand 0, single buffered']
    #allocation3 [shape = 's32[1]{0}', space=sflag, size = 0x4, scoped, tag = 'scoped memory for classifier_forward.1']
    %13 = vsyncpa [#allocation3], 0
    // Predicated region
    $region2: #{classifier_forward.1} parent=1 // pred_check
      _
    $region3: #{classifier_forward.1} parent=1 // pred_check_branch
      %15 = sbr.rel (0) target = $region5
    $region4: #{classifier_forward.1} parent=1 // pred_region
      _
    $region5: #{classifier_forward.1} parent=1 // pred_fallthru
      _
    // Predicated region
    $region6: #{classifier_forward.1} parent=1 // pred_check
      _
    $region7: #{classifier_forward.1} parent=1 // pred_check_branch
      %17 = sbr.rel (0) target = $region9
    $region8: #{classifier_forward.1} parent=1 // pred_region
      _
    $region9: #{classifier_forward.1} parent=1 // pred_fallthru
      _
    // Predicated region
    $region10: #{classifier_forward.1} parent=1 // pred_check
      _
    $region11: #{classifier_forward.1} parent=1 // pred_check_branch
      %19 = sbr.rel (0) target = $region13
    $region12: #{classifier_forward.1} parent=1 // pred_region
      _
    $region13: #{classifier_forward.1} parent=1 // pred_fallthru
      _
    // Predicated region
    $region14: #{classifier_forward.1} parent=1 // pred_check
      _
    $region15: #{classifier_forward.1} parent=1 // pred_check_branch
      %21 = sbr.rel (0) target = $region17
    $region16: #{classifier_forward.1} parent=1 // pred_region
      _
    $region17: #{classifier_forward.1} parent=1 // pred_fallthru
      _
    // Predicated region
    $region18: #{classifier_forward.1} parent=1 // pred_check
      _
    $region19: #{classifier_forward.1} parent=1 // pred_check_branch
      %23 = sbr.rel (0) target = $region21
    $region20: #{classifier_forward.1} parent=1 // pred_region
      _
    $region21: #{classifier_forward.1} parent=1 // pred_fallthru
      _
    // Predicated region
    $region22: #{classifier_forward.1} parent=1 // pred_check
      _
    $region23: #{classifier_forward.1} parent=1 // pred_check_branch
      %25 = sbr.rel (0) target = $region25
    $region24: #{classifier_forward.1} parent=1 // pred_region
      _
    $region25: #{classifier_forward.1} parent=1 // pred_fallthru
      _
    // Predicated region
    $region26: #{classifier_forward.1} parent=1 // pred_check
      _
    $region27: #{classifier_forward.1} parent=1 // pred_check_branch
      %27 = sbr.rel (0) target = $region29
    $region28: #{classifier_forward.1} parent=1 // pred_region
      _
    $region29: #{classifier_forward.1} parent=1 // pred_fallthru
      _
    // Predicated region
    $region30: #{classifier_forward.1} parent=1 // pred_check
      _
    $region31: #{classifier_forward.1} parent=1 // pred_check_branch
      %29 = sbr.rel (0) target = $region33
    $region32: #{classifier_forward.1} parent=1 // pred_region
      _
    $region33: #{classifier_forward.1} parent=1 // pred_fallthru
      _
    %v31 = vld [vmem:[%s1] sm:$0xf]
    %v32 = vld [vmem:[%s1 + $0x4] sm:$0xf]
    %v33 = vld [vmem:[%s1 + $0x8] sm:$0xf]
    %v34 = vld [vmem:[%s1 + $0xc] sm:$0x3]
    %v35 = vld [vmem:[%s2] sm:$0xf]
    %v36 = vld [vmem:[%s2 + $0x4] sm:$0xf]
    %v37 = vld [vmem:[%s2 + $0x8] sm:$0xf]
    %v38 = vld [vmem:[%s2 + $0xc] sm:$0xf]
    %v39 = vld [vmem:[%s2 + $0x10] sm:$0xf]
    %v40 = vld [vmem:[%s2 + $0x14] sm:$0xf]
    %v41 = vld [vmem:[%s2 + $0x18] sm:$0xf]
    %v42 = vld [vmem:[%s2 + $0x1c] sm:$0xf]
    %v43 = vld [vmem:[%s2 + $0x20] sm:$0xf]
    %v44 = vld [vmem:[%s2 + $0x24] sm:$0xf]
    %v45 = vld [vmem:[%s2 + $0x28] sm:$0xf]
    %v46 = vld [vmem:[%s2 + $0x2c] sm:$0xf]
    %v47 = vld [vmem:[%s2 + $0x30] sm:$0xf]
    %v48 = vld [vmem:[%s2 + $0x34] sm:$0xf]
    %v49 = vld [vmem:[%s2 + $0x38] sm:$0xf]
    %v50 = vld [vmem:[%s2 + $0x3c] sm:$0xf]
    %v51 = vld [vmem:[%s3] sm:$0x1]
    %v52 = vld [vmem:[%s4] sm:$0xf]
    %v53 = vld [vmem:[%s4 + $0x4] sm:$0xf]
    %v54 = vld [vmem:[%s4 + $0x8] sm:$0xf]
    %v55 = vld [vmem:[%s4 + $0xc] sm:$0xf]
    %v56 = vld [vmem:[%s4 + $0x10] sm:$0xf]
    %v57 = vld [vmem:[%s4 + $0x14] sm:$0xf]
    %v58 = vld [vmem:[%s4 + $0x18] sm:$0xf]
    %v59 = vld [vmem:[%s4 + $0x1c] sm:$0xf]
    %v60 = vld [vmem:[%s5] sm:$0x1]
    %v61 = vld [vmem:[%s6] sm:$0xf]
    %v62 = vld [vmem:[%s6 + $0x4] sm:$0xf]
    %v63 = vld [vmem:[%s6 + $0x8] sm:$0xf]
    %v64 = vld [vmem:[%s6 + $0xc] sm:$0xf]
    %v65 = vld [vmem:[%s7] sm:$0x1]
    %v66 = vld [vmem:[%s0] sm:$0xf]
    %v67 = vld [vmem:[%s0 + $0x4] sm:$0xf]
    %v70 = vunpack.c.l.b16 %v66
    %v71 = vunpack.c.l.b16 %v67
    %v72 = vpack.c.b16 %v71, %v70
    %v77 = vunpack.c.l.b16 %v31
    %v78 = vunpack.c.l.b16 %v32
    %v79 = vunpack.c.l.b16 %v33
    %v80 = vunpack.c.l.b16 %v34
    %v81 = vpack.c.b16 %v78, %v77
    %v82 = vpack.c.b16 %v80, %v79
    %vm84 = vcmask 228352
    %v86 = vsel %vm84, %v72, 0
    %vm88 = vcmask 1045504
    %v90 = vsel %vm88, %v82, 0
    %92 = vmatprep.subr.bf16.mxu0 0
    %93 = vmatpush1.bf16.msra.mxu0 0
    %94 = vmatprep.subr.bf16.mxu0 0
    %95 = vmatpush1.bf16.msra.mxu0 0
    %96 = vmatprep.subr.bf16.mxu0 0
    %97 = vmatpush1.bf16.msra.mxu0 0
    %98 = vmatprep.subr.bf16.mxu0 0
    %99 = vmatpush1.bf16.msra.mxu0 0
    %100 = vmatprep.subr.bf16.mxu0 0
    %101 = vmatpush1.bf16.msra.mxu0 0
    %102 = vmatprep.subr.bf16.mxu0 0
    %103 = vmatpush1.bf16.msra.mxu0 0
    %104 = vmatprep.subr.bf16.mxu0 0
    %105 = vmatpush1.bf16.msra.mxu0 %v90
    %106 = vmatprep.subr.bf16.mxu0 0
    %107 = vmatpush1.bf16.msra.mxu0 %v81
    %108 = vmatprep.subr.bf16.mxu0 0
    %109 = vmatpush2.bf16.msra.mxu0 0
    %110 = vmatprep.subr.bf16.mxu0 0
    %111 = vmatpush2.bf16.msra.mxu0 0
    %112 = vmatprep.subr.bf16.mxu0 0
    %113 = vmatpush2.bf16.msra.mxu0 0
    %114 = vmatprep.subr.bf16.mxu0 0
    %115 = vmatpush2.bf16.msra.mxu0 0
    %116 = vmatprep.subr.bf16.mxu0 0
    %117 = vmatpush2.bf16.msra.mxu0 0
    %118 = vmatprep.subr.bf16.mxu0 0
    %119 = vmatpush2.bf16.msra.mxu0 0
    %120 = vmatprep.subr.bf16.mxu0 0
    %121 = vmatpush2.bf16.msra.mxu0 0
    %122 = vmatprep.subr.bf16.mxu0 0
    %123 = vmatpush2.bf16.msra.mxu0 0
    %124 = vmatprep.mubr.bf16.mxu0 0
    %125 = vmatmul.mubr.bf16.gmra.mxu0 %v86
    %v126 = vpop.f32.mrf.mxu0
    %v127 = vadd.f32 0.0, %v126
    %v128 = vpop.f32.mrf.mxu0
    %v129 = vpop.f32.mrf.mxu0
    %v130 = vadd.f32 0.0, %v129
    %v131 = vpop.f32.mrf.mxu0
    %132 = vdwg.mxu0
    %v133 = vpack.c.bf16 %v130, %v127
    %v134 = vmax.bf16 %v133, 0
    %v151 = vunpack.c.l.b16 %v35
    %v152 = vunpack.c.l.b16 %v36
    %v153 = vunpack.c.l.b16 %v37
    %v154 = vunpack.c.l.b16 %v38
    %v155 = vunpack.c.l.b16 %v39
    %v156 = vunpack.c.l.b16 %v40
    %v157 = vunpack.c.l.b16 %v41
    %v158 = vunpack.c.l.b16 %v42
    %v159 = vunpack.c.l.b16 %v43
    %v160 = vunpack.c.l.b16 %v44
    %v161 = vunpack.c.l.b16 %v45
    %v162 = vunpack.c.l.b16 %v46
    %v163 = vunpack.c.l.b16 %v47
    %v164 = vunpack.c.l.b16 %v48
    %v165 = vunpack.c.l.b16 %v49
    %v166 = vunpack.c.l.b16 %v50
    %v167 = vpack.c.b16 %v152, %v151
    %v168 = vpack.c.b16 %v154, %v153
    %v169 = vpack.c.b16 %v156, %v155
    %v170 = vpack.c.b16 %v158, %v157
    %v171 = vpack.c.b16 %v160, %v159
    %v172 = vpack.c.b16 %v162, %v161
    %v173 = vpack.c.b16 %v164, %v163
    %v174 = vpack.c.b16 %v166, %v165
    %183 = vmatprep.subr.bf16.mxu0 0
    %184 = vmatpush1.bf16.msra.mxu0 %v174
    %185 = vmatprep.subr.bf16.mxu0 0
    %186 = vmatpush1.bf16.msra.mxu0 %v173
    %187 = vmatprep.subr.bf16.mxu0 0
    %188 = vmatpush1.bf16.msra.mxu0 %v172
    %189 = vmatprep.subr.bf16.mxu0 0
    %190 = vmatpush1.bf16.msra.mxu0 %v171
    %191 = vmatprep.subr.bf16.mxu0 0
    %192 = vmatpush1.bf16.msra.mxu0 %v170
    %193 = vmatprep.subr.bf16.mxu0 0
    %194 = vmatpush1.bf16.msra.mxu0 %v169
    %195 = vmatprep.subr.bf16.mxu0 0
    %196 = vmatpush1.bf16.msra.mxu0 %v168
    %197 = vmatprep.subr.bf16.mxu0 0
    %198 = vmatpush1.bf16.msra.mxu0 %v167
    %199 = vmatprep.subr.bf16.mxu0 0
    %200 = vmatpush2.bf16.msra.mxu0 0
    %201 = vmatprep.subr.bf16.mxu0 0
    %202 = vmatpush2.bf16.msra.mxu0 0
    %203 = vmatprep.subr.bf16.mxu0 0
    %204 = vmatpush2.bf16.msra.mxu0 0
    %205 = vmatprep.subr.bf16.mxu0 0
    %206 = vmatpush2.bf16.msra.mxu0 0
    %207 = vmatprep.subr.bf16.mxu0 0
    %208 = vmatpush2.bf16.msra.mxu0 0
    %209 = vmatprep.subr.bf16.mxu0 0
    %210 = vmatpush2.bf16.msra.mxu0 0
    %211 = vmatprep.subr.bf16.mxu0 0
    %212 = vmatpush2.bf16.msra.mxu0 0
    %213 = vmatprep.subr.bf16.mxu0 0
    %214 = vmatpush2.bf16.msra.mxu0 0
    %215 = vmatprep.mubr.bf16.mxu0 0
    %216 = vmatmul.mubr.bf16.gmra.mxu0 %v134
    %v217 = vpop.f32.mrf.mxu0
    %v218 = vadd.f32 0.0, %v217
    %v219 = vpop.f32.mrf.mxu0
    %v220 = vpop.f32.mrf.mxu0
    %v221 = vadd.f32 0.0, %v220
    %v222 = vpop.f32.mrf.mxu0
    %223 = vdwg.mxu0
    %v224 = vpack.c.bf16 %v221, %v218
    %v226 = vpack.i.b16 %v51, %v51
    %v228 = vlaneseq
    %v229 = vshrl.u32 %v228, 7
    %v230 = vsub.s32 0, %v229
    %v231 = vrot.slane %v226, %v230
    %v232 = vadd.bf16 %v224, %v231
    %v233 = vmax.bf16 %v232, 0
    %v242 = vunpack.c.l.b16 %v52
    %v243 = vunpack.c.l.b16 %v53
    %v244 = vunpack.c.l.b16 %v54
    %v245 = vunpack.c.l.b16 %v55
    %v246 = vunpack.c.l.b16 %v56
    %v247 = vunpack.c.l.b16 %v57
    %v248 = vunpack.c.l.b16 %v58
    %v249 = vunpack.c.l.b16 %v59
    %v250 = vpack.c.b16 %v243, %v242
    %v251 = vpack.c.b16 %v245, %v244
    %v252 = vpack.c.b16 %v247, %v246
    %v253 = vpack.c.b16 %v249, %v248
    %vm258 = vcmask 523264
    %v260 = vsel %vm258, %v233, 0
    %262 = vmatprep.subr.bf16.mxu0 0
    %263 = vmatpush1.bf16.msra.mxu0 0
    %264 = vmatprep.subr.bf16.mxu0 0
    %265 = vmatpush1.bf16.msra.mxu0 0
    %266 = vmatprep.subr.bf16.mxu0 0
    %267 = vmatpush1.bf16.msra.mxu0 0
    %268 = vmatprep.subr.bf16.mxu0 0
    %269 = vmatpush1.bf16.msra.mxu0 0
    %270 = vmatprep.subr.bf16.mxu0 0
    %271 = vmatpush1.bf16.msra.mxu0 %v253
    %272 = vmatprep.subr.bf16.mxu0 0
    %273 = vmatpush1.bf16.msra.mxu0 %v252
    %274 = vmatprep.subr.bf16.mxu0 0
    %275 = vmatpush1.bf16.msra.mxu0 %v251
    %276 = vmatprep.subr.bf16.mxu0 0
    %277 = vmatpush1.bf16.msra.mxu0 %v250
    %278 = vmatprep.subr.bf16.mxu0 0
    %279 = vmatpush2.bf16.msra.mxu0 0
    %280 = vmatprep.subr.bf16.mxu0 0
    %281 = vmatpush2.bf16.msra.mxu0 0
    %282 = vmatprep.subr.bf16.mxu0 0
    %283 = vmatpush2.bf16.msra.mxu0 0
    %284 = vmatprep.subr.bf16.mxu0 0
    %285 = vmatpush2.bf16.msra.mxu0 0
    %286 = vmatprep.subr.bf16.mxu0 0
    %287 = vmatpush2.bf16.msra.mxu0 0
    %288 = vmatprep.subr.bf16.mxu0 0
    %289 = vmatpush2.bf16.msra.mxu0 0
    %290 = vmatprep.subr.bf16.mxu0 0
    %291 = vmatpush2.bf16.msra.mxu0 0
    %292 = vmatprep.subr.bf16.mxu0 0
    %293 = vmatpush2.bf16.msra.mxu0 0
    %294 = vmatprep.mubr.bf16.mxu0 0
    %295 = vmatmul.mubr.bf16.gmra.mxu0 %v260
    %v296 = vpop.f32.mrf.mxu0
    %v297 = vadd.f32 0.0, %v296
    %v298 = vpop.f32.mrf.mxu0
    %v299 = vpop.f32.mrf.mxu0
    %v300 = vadd.f32 0.0, %v299
    %v301 = vpop.f32.mrf.mxu0
    %302 = vdwg.mxu0
    %v303 = vpack.c.bf16 %v300, %v297
    %v305 = vpack.i.b16 %v60, %v60
    %v307 = vlaneseq
    %v308 = vshrl.u32 %v307, 7
    %v309 = vsub.s32 0, %v308
    %v310 = vrot.slane %v305, %v309
    %v311 = vadd.bf16 %v303, %v310
    %v312 = vmax.bf16 %v311, 0
    %v314 = vlaneseq
    %v315 = vshrl.u32 %v314, 7
    %v316 = vsub.s32 0, %v315
    %v317 = vrot.slane %v65, %v316
    %v323 = vunpack.c.l.b16 %v61
    %v324 = vunpack.c.l.b16 %v62
    %v325 = vunpack.c.l.b16 %v63
    %v326 = vunpack.c.l.b16 %v64
    %v327 = vpack.c.b16 %v324, %v323
    %v328 = vpack.c.b16 %v326, %v325
    %vm331 = vcmask 261120
    %v333 = vsel %vm331, %v312, 0
    %335 = vmatprep.subr.bf16.mxu0 0
    %336 = vmatpush1.bf16.msra.mxu0 0
    %337 = vmatprep.subr.bf16.mxu0 0
    %338 = vmatpush1.bf16.msra.mxu0 0
    %339 = vmatprep.subr.bf16.mxu0 0
    %340 = vmatpush1.bf16.msra.mxu0 0
    %341 = vmatprep.subr.bf16.mxu0 0
    %342 = vmatpush1.bf16.msra.mxu0 0
    %343 = vmatprep.subr.bf16.mxu0 0
    %344 = vmatpush1.bf16.msra.mxu0 0
    %345 = vmatprep.subr.bf16.mxu0 0
    %346 = vmatpush1.bf16.msra.mxu0 0
    %347 = vmatprep.subr.bf16.mxu0 0
    %348 = vmatpush1.bf16.msra.mxu0 %v328
    %349 = vmatprep.subr.bf16.mxu0 0
    %350 = vmatpush1.bf16.msra.mxu0 %v327
    %351 = vmatprep.subr.bf16.mxu0 0
    %352 = vmatpush2.bf16.msra.mxu0 0
    %353 = vmatprep.subr.bf16.mxu0 0
    %354 = vmatpush2.bf16.msra.mxu0 0
    %355 = vmatprep.subr.bf16.mxu0 0
    %356 = vmatpush2.bf16.msra.mxu0 0
    %357 = vmatprep.subr.bf16.mxu0 0
    %358 = vmatpush2.bf16.msra.mxu0 0
    %359 = vmatprep.subr.bf16.mxu0 0
    %360 = vmatpush2.bf16.msra.mxu0 0
    %361 = vmatprep.subr.bf16.mxu0 0
    %362 = vmatpush2.bf16.msra.mxu0 0
    %363 = vmatprep.subr.bf16.mxu0 0
    %364 = vmatpush2.bf16.msra.mxu0 0
    %365 = vmatprep.subr.bf16.mxu0 0
    %366 = vmatpush2.bf16.msra.mxu0 0
    %367 = vmatprep.mubr.bf16.mxu0 0
    %368 = vmatmul.mubr.bf16.gmra.mxu0 %v333
    %v369 = vpop.f32.mrf.mxu0
    %v370 = vadd.f32 %v317, %v369
    %v371 = vpop.f32.mrf.mxu0
    %v372 = vpop.f32.mrf.mxu0
    %v373 = vadd.f32 %v317, %v372
    %v374 = vpop.f32.mrf.mxu0
    %375 = vdwg.mxu0
    %vm376 = vcmask 56320
    %377 = vst.msk [vmem:[#allocation2] sm:$0xff] %vm376, %v370
    %378 = vst.msk [vmem:[#allocation2 + $0x8] sm:$0xff] %vm376, %v373
    // Predicated region
    $region34: #{classifier_forward.1} parent=1 // pred_check
      _
    $region35: #{classifier_forward.1} parent=1 // pred_check_branch
      %380 = sbr.rel (0) target = $region37
    $region36: #{classifier_forward.1} parent=1 // pred_region
      %s382 = ssub.s32 256, 128
      %383 = vsyncadd [#allocation3], %s382
      %s384 = sshll.u32 [#allocation2], 4
      %s385 = int_to_ptr.vmem [resolvable:$true] %s384
      %390 = dma.vmem_to_hbm [thread:$0]  %s385, 128, %s8, [#allocation3], 128, 128, 8
    $region37: #{classifier_forward.1} parent=1 // pred_fallthru
      _
    // Predicated region
    $region38: #{classifier_forward.1} parent=1 // pred_check
      _
    $region39: #{classifier_forward.1} parent=1 // pred_check_branch
      %392 = sbr.rel (0) target = $region41
    $region40: #{classifier_forward.1} parent=1 // pred_region
      %393 = dma.done [#allocation3], 256
    $region41: #{classifier_forward.1} parent=1 // pred_fallthru
      _
    %394 = vsyncpa [#allocation3], 1

</llo_original>
